<compile_context>
chip_gen: v5e
topology: v5e:2x2
jax: 0.10.0
libtpu: 0.0.40
codegen_flags: <defaults>
</compile_context>

<pallas_src>
import jax
import jax.numpy as jnp
from jax.experimental import pallas as pl
from jax.experimental.pallas import tpu as pltpu

INPUT_DIM = 120
LAYERS = [64, 32, 16]
OUT_DIM = LAYERS[-1]


def _round_up(x, m):
    return (x + m - 1) // m * m


def mlp_kernel(ud_ref, iw_ref, ic_ref,
               w1a_ref, w1b_ref, w1c_ref, b1_ref,
               w2_ref, b2_ref, w3_ref, b3_ref,
               o_ref):
    # Layer 1: split-weight matmul replaces the lane-axis concat.
    h = jnp.dot(ud_ref[...], w1a_ref[...], preferred_element_type=jnp.float32)
    h += jnp.dot(iw_ref[...], w1b_ref[...], preferred_element_type=jnp.float32)
    h += jnp.dot(ic_ref[...], w1c_ref[...], preferred_element_type=jnp.float32)
    h = jnp.maximum(h + b1_ref[...], 0.0)          # bias + ReLU in f32

    # Layer 2 (bf16 MXU inputs, f32 accumulation / elementwise).
    h = jnp.dot(h.astype(jnp.bfloat16), w2_ref[...],
                preferred_element_type=jnp.float32)
    h = jnp.maximum(h + b2_ref[...], 0.0)

    # Layer 3.
    h = jnp.dot(h.astype(jnp.bfloat16), w3_ref[...],
                preferred_element_type=jnp.float32)
    h = jnp.maximum(h + b3_ref[...], 0.0)

    o_ref[...] = h.astype(o_ref.dtype)


def mlp_forward(user_doc, item_word, item_content, params, tile_b=1024):
    """params = (w1, b1, w2, b2, w3, b3) with w_i: (in, out), b_i: (1, out)."""
    B = user_doc.shape[0]
    d1 = user_doc.shape[1]
    d2 = item_word.shape[1]
    d3 = item_content.shape[1]
    w1, b1, w2, b2, w3, b3 = params

    # Split W1 by the row blocks that the concat would have contributed.
    w1a, w1b, w1c = w1[:d1], w1[d1:d1 + d2], w1[d1 + d2:]

    # bf16 at the HBM boundary (MXU-native input type on v5e/v6e/v7x);
    # biases stay f32 and are added after the f32 accumulation.
    bf16 = lambda a: a.astype(jnp.bfloat16)
    ud, iw, ic = bf16(user_doc), bf16(item_word), bf16(item_content)
    w1a, w1b, w1c = bf16(w1a), bf16(w1b), bf16(w1c)
    w2b, w3b = bf16(w2), bf16(w3)

    # Tile the batch; pad so the grid divides evenly (sublane multiple of 8).
    tile = min(tile_b, _round_up(B, 8))
    b_pad = _round_up(B, tile)
    pad = b_pad - B
    if pad:
        pad_rows = lambda a: jnp.pad(a, ((0, pad), (0, 0)))
        ud, iw, ic = pad_rows(ud), pad_rows(iw), pad_rows(ic)

    grid = (b_pad // tile,)
    act_spec = lambda feat: pl.BlockSpec((tile, feat), lambda i: (i, 0))
    # Constant index_map -> weights/biases resident across all grid steps.
    const_spec = lambda a: pl.BlockSpec(a.shape, lambda i: (0, 0))

    out = pl.pallas_call(
        mlp_kernel,
        out_shape=jax.ShapeDtypeStruct((b_pad, OUT_DIM), jnp.float32),
        grid=grid,
        in_specs=[act_spec(d1), act_spec(d2), act_spec(d3),
                  const_spec(w1a), const_spec(w1b), const_spec(w1c),
                  const_spec(b1),
                  const_spec(w2b), const_spec(b2),
                  const_spec(w3b), const_spec(b3)],
        out_specs=pl.BlockSpec((tile, OUT_DIM), lambda i: (i, 0)),
        compiler_params=pltpu.CompilerParams(
            dimension_semantics=("parallel",)),
    )(ud, iw, ic, w1a, w1b, w1c, b1, w2b, b2, w3b, b3)

    return out[:B]


def init_params(key, input_dim=INPUT_DIM, layers=LAYERS):
    """Deterministic init mimicking nn.Linear default (uniform +/- 1/sqrt(fan_in))."""
    params = []
    prev = input_dim
    for layer_size in layers:
        key, kw, kb = jax.random.split(key, 3)
        bound = 1.0 / jnp.sqrt(prev)
        w = jax.random.uniform(kw, (prev, layer_size), jnp.float32, -bound, bound)
        b = jax.random.uniform(kb, (1, layer_size), jnp.float32, -bound, bound)
        params += [w, b]
        prev = layer_size
    return tuple(params)


def mlp_reference(user_doc, item_word, item_content, params):
    """f32 reference with the same bf16 quantization at the MXU boundaries."""
    q = lambda a: a.astype(jnp.bfloat16).astype(jnp.float32)
    w1, b1, w2, b2, w3, b3 = params
    x = q(jnp.concatenate([user_doc, item_word, item_content], axis=1))
    h = jnp.maximum(x @ q(w1) + b1, 0.0)
    h = jnp.maximum(q(h) @ q(w2) + b2, 0.0)
    h = jnp.maximum(q(h) @ q(w3) + b3, 0.0)
    return h


if __name__ == "__main__":
    key = jax.random.PRNGKey(0)
    kp, kdata = jax.random.split(key)
    params = init_params(kp)

    # B=8: single-tile path.  B=3000: multi-tile grid (tile=1024) + padded tail.
    for B in (8, 3000):
        k1, k2, k3 = jax.random.split(jax.random.fold_in(kdata, B), 3)
        user_doc = jax.random.normal(k1, (B, 40), jnp.float32)
        item_word = jax.random.normal(k2, (B, 40), jnp.float32)
        item_content = jax.random.normal(k3, (B, 40), jnp.float32)

        out = jax.block_until_ready(
            mlp_forward(user_doc, item_word, item_content, params))
        ref = mlp_reference(user_doc, item_word, item_content, params)

        assert out.shape == (B, OUT_DIM), out.shape
        assert jnp.allclose(out, ref, atol=2e-3, rtol=2e-3), \
            f"mismatch vs reference at B={B}"

    print("KERNEL_OK")
</pallas_src>

<mosaic_0001>
module attributes {stable_mosaic.version = 11 : i64} {
  func.func @mlp_kernel(%arg0: i32, %arg1: memref<8x40xbf16, #tpu.memory_space<vmem>>, %arg2: memref<8x40xbf16, #tpu.memory_space<vmem>>, %arg3: memref<8x40xbf16, #tpu.memory_space<vmem>>, %arg4: memref<40x64xbf16, #tpu.memory_space<vmem>>, %arg5: memref<40x64xbf16, #tpu.memory_space<vmem>>, %arg6: memref<40x64xbf16, #tpu.memory_space<vmem>>, %arg7: memref<1x64xf32, #tpu.memory_space<vmem>>, %arg8: memref<64x32xbf16, #tpu.memory_space<vmem>>, %arg9: memref<1x32xf32, #tpu.memory_space<vmem>>, %arg10: memref<32x16xbf16, #tpu.memory_space<vmem>>, %arg11: memref<1x16xf32, #tpu.memory_space<vmem>>, %arg12: memref<8x16xf32, #tpu.memory_space<vmem>>) attributes {dimension_semantics = [#tpu.dimension_semantics<parallel>], iteration_bounds = array<i64: 1>, scalar_prefetch = 0 : i64, scratch_operands = 0 : i64, tpu.core_type = #tpu.core_type<tc>, window_params = [{transform_indices = @transform_0, window_bounds = array<i64: 8, 40>}, {transform_indices = @transform_1, window_bounds = array<i64: 8, 40>}, {transform_indices = @transform_2, window_bounds = array<i64: 8, 40>}, {pipeline_mode = #tpu.pipeline_mode<synchronous>, transform_indices = @transform_3, window_bounds = array<i64: 40, 64>}, {pipeline_mode = #tpu.pipeline_mode<synchronous>, transform_indices = @transform_4, window_bounds = array<i64: 40, 64>}, {pipeline_mode = #tpu.pipeline_mode<synchronous>, transform_indices = @transform_5, window_bounds = array<i64: 40, 64>}, {pipeline_mode = #tpu.pipeline_mode<synchronous>, transform_indices = @transform_6, window_bounds = array<i64: 1, 64>}, {pipeline_mode = #tpu.pipeline_mode<synchronous>, transform_indices = @transform_7, window_bounds = array<i64: 64, 32>}, {pipeline_mode = #tpu.pipeline_mode<synchronous>, transform_indices = @transform_8, window_bounds = array<i64: 1, 32>}, {pipeline_mode = #tpu.pipeline_mode<synchronous>, transform_indices = @transform_9, window_bounds = array<i64: 32, 16>}, {pipeline_mode = #tpu.pipeline_mode<synchronous>, transform_indices = @transform_10, window_bounds = array<i64: 1, 16>}, {transform_indices = @transform_11, window_bounds = array<i64: 8, 16>}]} {
    %c0 = arith.constant 0 : index
    %c0_0 = arith.constant 0 : index
    %0 = vector.load %arg1[%c0, %c0_0] : memref<8x40xbf16, #tpu.memory_space<vmem>>, vector<8x40xbf16>
    %c0_1 = arith.constant 0 : index
    %c0_2 = arith.constant 0 : index
    %1 = vector.load %arg4[%c0_1, %c0_2] : memref<40x64xbf16, #tpu.memory_space<vmem>>, vector<40x64xbf16>
    %cst = arith.constant dense<0.000000e+00> : vector<8x64xf32>
    %2 = tpu.matmul %0, %1, %cst {dimension_numbers = #tpu.dot_dimension_numbers<[1], [0], [0], [1], [0, 0, 1, 1], [], []>} : vector<8x40xbf16>, vector<40x64xbf16>, vector<8x64xf32> -> vector<8x64xf32>
    %c0_3 = arith.constant 0 : index
    %c0_4 = arith.constant 0 : index
    %3 = vector.load %arg2[%c0_3, %c0_4] : memref<8x40xbf16, #tpu.memory_space<vmem>>, vector<8x40xbf16>
    %c0_5 = arith.constant 0 : index
    %c0_6 = arith.constant 0 : index
    %4 = vector.load %arg5[%c0_5, %c0_6] : memref<40x64xbf16, #tpu.memory_space<vmem>>, vector<40x64xbf16>
    %cst_7 = arith.constant dense<0.000000e+00> : vector<8x64xf32>
    %5 = tpu.matmul %3, %4, %cst_7 {dimension_numbers = #tpu.dot_dimension_numbers<[1], [0], [0], [1], [0, 0, 1, 1], [], []>} : vector<8x40xbf16>, vector<40x64xbf16>, vector<8x64xf32> -> vector<8x64xf32>
    %6 = arith.addf %2, %5 : vector<8x64xf32>
    %c0_8 = arith.constant 0 : index
    %c0_9 = arith.constant 0 : index
    %7 = vector.load %arg3[%c0_8, %c0_9] : memref<8x40xbf16, #tpu.memory_space<vmem>>, vector<8x40xbf16>
    %c0_10 = arith.constant 0 : index
    %c0_11 = arith.constant 0 : index
    %8 = vector.load %arg6[%c0_10, %c0_11] : memref<40x64xbf16, #tpu.memory_space<vmem>>, vector<40x64xbf16>
    %cst_12 = arith.constant dense<0.000000e+00> : vector<8x64xf32>
    %9 = tpu.matmul %7, %8, %cst_12 {dimension_numbers = #tpu.dot_dimension_numbers<[1], [0], [0], [1], [0, 0, 1, 1], [], []>} : vector<8x40xbf16>, vector<40x64xbf16>, vector<8x64xf32> -> vector<8x64xf32>
    %10 = arith.addf %6, %9 : vector<8x64xf32>
    %c0_13 = arith.constant 0 : index
    %c0_14 = arith.constant 0 : index
    %11 = vector.load %arg7[%c0_13, %c0_14] : memref<1x64xf32, #tpu.memory_space<vmem>>, vector<1x64xf32>
    %12 = vector.broadcast %11 : vector<1x64xf32> to vector<8x64xf32>
    %13 = arith.addf %10, %12 : vector<8x64xf32>
    %cst_15 = arith.constant 0.000000e+00 : f32
    %14 = vector.broadcast %cst_15 : f32 to vector<8x64xf32>
    %15 = arith.maximumf %13, %14 : vector<8x64xf32>
    %16 = arith.truncf %15 : vector<8x64xf32> to vector<8x64xbf16>
    %c0_16 = arith.constant 0 : index
    %c0_17 = arith.constant 0 : index
    %17 = vector.load %arg8[%c0_16, %c0_17] : memref<64x32xbf16, #tpu.memory_space<vmem>>, vector<64x32xbf16>
    %cst_18 = arith.constant dense<0.000000e+00> : vector<8x32xf32>
    %18 = tpu.matmul %16, %17, %cst_18 {dimension_numbers = #tpu.dot_dimension_numbers<[1], [0], [0], [1], [0, 0, 1, 1], [], []>} : vector<8x64xbf16>, vector<64x32xbf16>, vector<8x32xf32> -> vector<8x32xf32>
    %c0_19 = arith.constant 0 : index
    %c0_20 = arith.constant 0 : index
    %19 = vector.load %arg9[%c0_19, %c0_20] : memref<1x32xf32, #tpu.memory_space<vmem>>, vector<1x32xf32>
    %20 = vector.broadcast %19 : vector<1x32xf32> to vector<8x32xf32>
    %21 = arith.addf %18, %20 : vector<8x32xf32>
    %cst_21 = arith.constant 0.000000e+00 : f32
    %22 = vector.broadcast %cst_21 : f32 to vector<8x32xf32>
    %23 = arith.maximumf %21, %22 : vector<8x32xf32>
    %24 = arith.truncf %23 : vector<8x32xf32> to vector<8x32xbf16>
    %c0_22 = arith.constant 0 : index
    %c0_23 = arith.constant 0 : index
    %25 = vector.load %arg10[%c0_22, %c0_23] : memref<32x16xbf16, #tpu.memory_space<vmem>>, vector<32x16xbf16>
    %cst_24 = arith.constant dense<0.000000e+00> : vector<8x16xf32>
    %26 = tpu.matmul %24, %25, %cst_24 {dimension_numbers = #tpu.dot_dimension_numbers<[1], [0], [0], [1], [0, 0, 1, 1], [], []>} : vector<8x32xbf16>, vector<32x16xbf16>, vector<8x16xf32> -> vector<8x16xf32>
    %c0_25 = arith.constant 0 : index
    %c0_26 = arith.constant 0 : index
    %27 = vector.load %arg11[%c0_25, %c0_26] : memref<1x16xf32, #tpu.memory_space<vmem>>, vector<1x16xf32>
    %28 = vector.broadcast %27 : vector<1x16xf32> to vector<8x16xf32>
    %29 = arith.addf %26, %28 : vector<8x16xf32>
    %cst_27 = arith.constant 0.000000e+00 : f32
    %30 = vector.broadcast %cst_27 : f32 to vector<8x16xf32>
    %31 = arith.maximumf %29, %30 : vector<8x16xf32>
    %c0_28 = arith.constant 0 : index
    %c0_29 = arith.constant 0 : index
    %32 = vector.load %arg12[%c0_28, %c0_29] : memref<8x16xf32, #tpu.memory_space<vmem>>, vector<8x16xf32>
    tpu.vector_store %arg12[%c0_28, %c0_29], %31 {strides = array<i32>} : memref<8x16xf32, #tpu.memory_space<vmem>>, vector<8x16xf32>,
    return
  }
  func.func @transform_0(%arg0: i32) -> (i32, i32) {
    %c0_i32 = arith.constant 0 : i32
    %c0_i32_0 = arith.constant 0 : i32
    return %arg0, %c0_i32 : i32, i32
  }
  func.func @transform_1(%arg0: i32) -> (i32, i32) {
    %c0_i32 = arith.constant 0 : i32
    %c0_i32_0 = arith.constant 0 : i32
    return %arg0, %c0_i32 : i32, i32
  }
  func.func @transform_2(%arg0: i32) -> (i32, i32) {
    %c0_i32 = arith.constant 0 : i32
    %c0_i32_0 = arith.constant 0 : i32
    return %arg0, %c0_i32 : i32, i32
  }
  func.func @transform_3(%arg0: i32) -> (i32, i32) {
    %c0_i32 = arith.constant 0 : i32
    %c0_i32_0 = arith.constant 0 : i32
    %c0_i32_1 = arith.constant 0 : i32
    return %c0_i32, %c0_i32_0 : i32, i32
  }
  func.func @transform_4(%arg0: i32) -> (i32, i32) {
    %c0_i32 = arith.constant 0 : i32
    %c0_i32_0 = arith.constant 0 : i32
    %c0_i32_1 = arith.constant 0 : i32
    return %c0_i32, %c0_i32_0 : i32, i32
  }
  func.func @transform_5(%arg0: i32) -> (i32, i32) {
    %c0_i32 = arith.constant 0 : i32
    %c0_i32_0 = arith.constant 0 : i32
    %c0_i32_1 = arith.constant 0 : i32
    return %c0_i32, %c0_i32_0 : i32, i32
  }
  func.func @transform_6(%arg0: i32) -> (i32, i32) {
    %c0_i32 = arith.constant 0 : i32
    %c0_i32_0 = arith.constant 0 : i32
    %c0_i32_1 = arith.constant 0 : i32
    return %c0_i32, %c0_i32_0 : i32, i32
  }
  func.func @transform_7(%arg0: i32) -> (i32, i32) {
    %c0_i32 = arith.constant 0 : i32
    %c0_i32_0 = arith.constant 0 : i32
    %c0_i32_1 = arith.constant 0 : i32
    return %c0_i32, %c0_i32_0 : i32, i32
  }
  func.func @transform_8(%arg0: i32) -> (i32, i32) {
    %c0_i32 = arith.constant 0 : i32
    %c0_i32_0 = arith.constant 0 : i32
    %c0_i32_1 = arith.constant 0 : i32
    return %c0_i32, %c0_i32_0 : i32, i32
  }
  func.func @transform_9(%arg0: i32) -> (i32, i32) {
    %c0_i32 = arith.constant 0 : i32
    %c0_i32_0 = arith.constant 0 : i32
    %c0_i32_1 = arith.constant 0 : i32
    return %c0_i32, %c0_i32_0 : i32, i32
  }
  func.func @transform_10(%arg0: i32) -> (i32, i32) {
    %c0_i32 = arith.constant 0 : i32
    %c0_i32_0 = arith.constant 0 : i32
    %c0_i32_1 = arith.constant 0 : i32
    return %c0_i32, %c0_i32_0 : i32, i32
  }
  func.func @transform_11(%arg0: i32) -> (i32, i32) {
    %c0_i32 = arith.constant 0 : i32
    %c0_i32_0 = arith.constant 0 : i32
    return %arg0, %c0_i32 : i32, i32
  }
}

</mosaic_0001>

<llo_original>
// kernel: tpu_custom_call.1
$region0: #{tpu_custom_call.1}
  #allocation0 [shape = 'u32[]', space=smem, size = 0x4, offset = 0x4, fixed_abs, tag = 'smem constant byte address 0x4 - core index']
  #allocation1 [shape = 'u32[72,128]{1,0:T(1,128)}', space=vmem, size = 0x9000, scoped, tag = 'internal scratch']
  %s0 = inlined_call_operand.vmem [shape: bf16[8,40], index: 0, kind: input, shape index: {}]
  %s1 = inlined_call_operand.vmem [shape: bf16[8,40], index: 1, kind: input, shape index: {}]
  %s2 = inlined_call_operand.vmem [shape: bf16[8,40], index: 2, kind: input, shape index: {}]
  %s3 = inlined_call_operand.vmem [shape: bf16[40,64], index: 3, kind: input, shape index: {}]
  %s4 = inlined_call_operand.vmem [shape: bf16[40,64], index: 4, kind: input, shape index: {}]
  %s5 = inlined_call_operand.hbm [shape: bf16[40,64], index: 5, kind: input, shape index: {}]
  %s6 = inlined_call_operand.vmem [shape: f32[1,64], index: 6, kind: input, shape index: {}]
  %s7 = inlined_call_operand.vmem [shape: bf16[64,32], index: 7, kind: input, shape index: {}]
  %s8 = inlined_call_operand.vmem [shape: f32[1,32], index: 8, kind: input, shape index: {}]
  %s9 = inlined_call_operand.vmem [shape: bf16[32,16], index: 9, kind: input, shape index: {}]
  %s10 = inlined_call_operand.vmem [shape: f32[1,16], index: 10, kind: input, shape index: {}]
  %s11 = inlined_call_operand.hbm [shape: f32[8,16], index: 11, kind: output, shape index: {}]
  %s12 = sld [smem:[#allocation0]]
  $region58: #{tpu_custom_call.1} parent=0
    _
  %s14 = ssub.s32 1, %s12
  %s15 = scalar_select 0, %s14, %s12
  $region1: #{tpu_custom_call.1} parent=0
    #allocation2 [shape = 'u8[10240]{0}', space=vmem, size = 0x2800, scoped, tag = 'input window, operand 5, single buffered']
    #allocation3 [shape = 's32[1]{0}', space=sflag, size = 0x4, scoped, tag = 'scoped memory for tpu_custom_call.1']
    #allocation4 [shape = 's32[1]{0}', space=sflag, size = 0x4, scoped, tag = 'scoped memory for tpu_custom_call.1']
    #allocation5 [shape = 'u8[4096]{0}', space=vmem, size = 0x1000, scoped, tag = 'output window, operand 0, single buffered']
    %16 = vsyncpa [#allocation3], 0
    %17 = vsyncpa [#allocation4], 0
    // Predicated region
    $region2: #{tpu_custom_call.1} parent=1 // pred_check
      _
    $region3: #{tpu_custom_call.1} parent=1 // pred_check_branch
      %19 = sbr.rel (0) target = $region5
    $region4: #{tpu_custom_call.1} parent=1 // pred_region
      _
    $region5: #{tpu_custom_call.1} parent=1 // pred_fallthru
      _
    // Predicated region
    $region6: #{tpu_custom_call.1} parent=1 // pred_check
      _
    $region7: #{tpu_custom_call.1} parent=1 // pred_check_branch
      %21 = sbr.rel (0) target = $region9
    $region8: #{tpu_custom_call.1} parent=1 // pred_region
      _
    $region9: #{tpu_custom_call.1} parent=1 // pred_fallthru
      _
    // Predicated region
    $region10: #{tpu_custom_call.1} parent=1 // pred_check
      _
    $region11: #{tpu_custom_call.1} parent=1 // pred_check_branch
      %23 = sbr.rel (0) target = $region13
    $region12: #{tpu_custom_call.1} parent=1 // pred_region
      _
    $region13: #{tpu_custom_call.1} parent=1 // pred_fallthru
      _
    // Predicated region
    $region14: #{tpu_custom_call.1} parent=1 // pred_check
      _
    $region15: #{tpu_custom_call.1} parent=1 // pred_check_branch
      %25 = sbr.rel (0) target = $region17
    $region16: #{tpu_custom_call.1} parent=1 // pred_region
      _
    $region17: #{tpu_custom_call.1} parent=1 // pred_fallthru
      _
    // Predicated region
    $region18: #{tpu_custom_call.1} parent=1 // pred_check
      _
    $region19: #{tpu_custom_call.1} parent=1 // pred_check_branch
      %27 = sbr.rel (0) target = $region21
    $region20: #{tpu_custom_call.1} parent=1 // pred_region
      _
    $region21: #{tpu_custom_call.1} parent=1 // pred_fallthru
      _
    // Predicated region
    $region22: #{tpu_custom_call.1} parent=1 // pred_check
      _
    $region23: #{tpu_custom_call.1} parent=1 // pred_check_branch
      %29 = sbr.rel (0) target = $region25
    $region24: #{tpu_custom_call.1} parent=1 // pred_region
      %31 = vsyncadd [#allocation3], 0
      %s32 = sshll.u32 %s5, 4
      %s33 = int_to_ptr.hbm [resolvable:$true] %s32
      %s34 = sshll.u32 [#allocation2], 4
      %s35 = int_to_ptr.vmem [resolvable:$true] %s34
      %40 = dma.hbm_to_vmem [thread:$0]  %s33, 320, %s35, [#allocation3], 64, 64, 4
    $region25: #{tpu_custom_call.1} parent=1 // pred_fallthru
      _
    // Predicated region
    $region26: #{tpu_custom_call.1} parent=1 // pred_check
      _
    $region27: #{tpu_custom_call.1} parent=1 // pred_check_branch
      %42 = sbr.rel (0) target = $region29
    $region28: #{tpu_custom_call.1} parent=1 // pred_region
      _
    $region29: #{tpu_custom_call.1} parent=1 // pred_fallthru
      _
    // Predicated region
    $region30: #{tpu_custom_call.1} parent=1 // pred_check
      _
    $region31: #{tpu_custom_call.1} parent=1 // pred_check_branch
      %44 = sbr.rel (0) target = $region33
    $region32: #{tpu_custom_call.1} parent=1 // pred_region
      _
    $region33: #{tpu_custom_call.1} parent=1 // pred_fallthru
      _
    // Predicated region
    $region34: #{tpu_custom_call.1} parent=1 // pred_check
      _
    $region35: #{tpu_custom_call.1} parent=1 // pred_check_branch
      %46 = sbr.rel (0) target = $region37
    $region36: #{tpu_custom_call.1} parent=1 // pred_region
      _
    $region37: #{tpu_custom_call.1} parent=1 // pred_fallthru
      _
    // Predicated region
    $region38: #{tpu_custom_call.1} parent=1 // pred_check
      _
    $region39: #{tpu_custom_call.1} parent=1 // pred_check_branch
      %48 = sbr.rel (0) target = $region41
    $region40: #{tpu_custom_call.1} parent=1 // pred_region
      _
    $region41: #{tpu_custom_call.1} parent=1 // pred_fallthru
      _
    // Predicated region
    $region42: #{tpu_custom_call.1} parent=1 // pred_check
      _
    $region43: #{tpu_custom_call.1} parent=1 // pred_check_branch
      %50 = sbr.rel (0) target = $region45
    $region44: #{tpu_custom_call.1} parent=1 // pred_region
      _
    $region45: #{tpu_custom_call.1} parent=1 // pred_fallthru
      _
    // Predicated region
    $region46: #{tpu_custom_call.1} parent=1 // pred_check
      _
    $region47: #{tpu_custom_call.1} parent=1 // pred_check_branch
      %52 = sbr.rel (0) target = $region49
    $region48: #{tpu_custom_call.1} parent=1 // pred_region
      %54 = dma.done [#allocation3], 320
    $region49: #{tpu_custom_call.1} parent=1 // pred_fallthru
      _
    %v56 = vld [vmem:[%s0] sm:$0xf]
    %v57 = vld [vmem:[%s3] sm:$0xf]
    %v58 = vld [vmem:[%s3 + $0x4] sm:$0xf]
    %v59 = vld [vmem:[%s3 + $0x8] sm:$0xf]
    %v60 = vld [vmem:[%s3 + $0xc] sm:$0xf]
    %v61 = vld [vmem:[%s3 + $0x10] sm:$0xf]
    %v62 = vld [vmem:[%s1] sm:$0xf]
    %v63 = vld [vmem:[%s4] sm:$0xf]
    %v64 = vld [vmem:[%s4 + $0x4] sm:$0xf]
    %v65 = vld [vmem:[%s4 + $0x8] sm:$0xf]
    %v66 = vld [vmem:[%s4 + $0xc] sm:$0xf]
    %v67 = vld [vmem:[%s4 + $0x10] sm:$0xf]
    %v73 = vunpack.c.l.b16 %v63
    %v74 = vunpack.c.l.b16 %v64
    %v75 = vunpack.c.l.b16 %v65
    %v76 = vunpack.c.l.b16 %v66
    %v77 = vunpack.c.l.b16 %v67
    %v78 = vpack.c.b16 %v74, %v73
    %v79 = vpack.c.b16 %v76, %v75
    %v80 = vpack.c.b16 %v77, %v77
    %vm83 = vcmask 326656
    %v85 = vsel %vm83, %v62, 0
    %vm87 = vcmask 1043456
    %v89 = vsel %vm87, %v80, 0
    %91 = vmatpush.bf16.msra.mxu0 0
    %92 = vmatpush.bf16.msra.mxu0 0
    %93 = vmatpush.bf16.msra.mxu0 0
    %94 = vmatpush.bf16.msra.mxu0 0
    %95 = vmatpush.bf16.msra.mxu0 0
    %96 = vmatpush.bf16.msra.mxu0 %v89
    %97 = vmatpush.bf16.msra.mxu0 %v79
    %98 = vmatpush.bf16.msra.mxu0 %v78
    %99 = vmatmul.bf16.gmra.mxu0 %v85
    %v100 = vpop.f32.mrf.mxu0
    %v101 = vadd.f32 0.0, %v100
    %v102 = vpop.f32.mrf.mxu0
    %103 = vdwg.mxu0
    %v109 = vunpack.c.l.b16 %v57
    %v110 = vunpack.c.l.b16 %v58
    %v111 = vunpack.c.l.b16 %v59
    %v112 = vunpack.c.l.b16 %v60
    %v113 = vunpack.c.l.b16 %v61
    %v114 = vpack.c.b16 %v110, %v109
    %v115 = vpack.c.b16 %v112, %v111
    %v116 = vpack.c.b16 %v113, %v113
    %v120 = vsel %vm83, %v56, 0
    %v123 = vsel %vm87, %v116, 0
    %125 = vmatpush.bf16.msra.mxu0 0
    %126 = vmatpush.bf16.msra.mxu0 0
    %127 = vmatpush.bf16.msra.mxu0 0
    %128 = vmatpush.bf16.msra.mxu0 0
    %129 = vmatpush.bf16.msra.mxu0 0
    %130 = vmatpush.bf16.msra.mxu0 %v123
    %131 = vmatpush.bf16.msra.mxu0 %v115
    %132 = vmatpush.bf16.msra.mxu0 %v114
    %133 = vmatmul.bf16.gmra.mxu0 %v120
    %v134 = vpop.f32.mrf.mxu0
    %v135 = vadd.f32 %v101, %v134
    %v136 = vpop.f32.mrf.mxu0
    %137 = vdwg.mxu0
    %v138 = vld [vmem:[%s2] sm:$0xf]
    %v139 = vld [vmem:[#allocation2] sm:$0xf]
    %v140 = vld [vmem:[#allocation2 + $0x4] sm:$0xf]
    %v141 = vld [vmem:[#allocation2 + $0x8] sm:$0xf]
    %v142 = vld [vmem:[#allocation2 + $0xc] sm:$0xf]
    %v143 = vld [vmem:[#allocation2 + $0x10] sm:$0xf]
    %v149 = vunpack.c.l.b16 %v139
    %v150 = vunpack.c.l.b16 %v140
    %v151 = vunpack.c.l.b16 %v141
    %v152 = vunpack.c.l.b16 %v142
    %v153 = vunpack.c.l.b16 %v143
    %v154 = vpack.c.b16 %v150, %v149
    %v155 = vpack.c.b16 %v152, %v151
    %v156 = vpack.c.b16 %v153, %v153
    %v160 = vsel %vm83, %v138, 0
    %v163 = vsel %vm87, %v156, 0
    %165 = vmatpush.bf16.msra.mxu0 0
    %166 = vmatpush.bf16.msra.mxu0 0
    %167 = vmatpush.bf16.msra.mxu0 0
    %168 = vmatpush.bf16.msra.mxu0 0
    %169 = vmatpush.bf16.msra.mxu0 0
    %170 = vmatpush.bf16.msra.mxu0 %v163
    %171 = vmatpush.bf16.msra.mxu0 %v155
    %172 = vmatpush.bf16.msra.mxu0 %v154
    %173 = vmatmul.bf16.gmra.mxu0 %v160
    %v174 = vpop.f32.mrf.mxu0
    %v175 = vadd.f32 0.0, %v174
    %v176 = vpop.f32.mrf.mxu0
    %177 = vdwg.mxu0
    %v178 = vadd.f32 %v135, %v175
    %v179 = vld [vmem:[%s6] sm:$0x1]
    %v181 = vperm.slane %v179, 0
    %v183 = vadd.f32 %v178, %v181
    %v184 = vmax.f32 %v183, 0.0
    %v185 = vpack.c.bf16 %v184, %v184
    %v186 = vld [vmem:[%s7] sm:$0xf]
    %v187 = vld [vmem:[%s7 + $0x4] sm:$0xf]
    %v188 = vld [vmem:[%s7 + $0x8] sm:$0xf]
    %v189 = vld [vmem:[%s7 + $0xc] sm:$0xf]
    %v190 = vld [vmem:[%s7 + $0x10] sm:$0xf]
    %v191 = vld [vmem:[%s7 + $0x14] sm:$0xf]
    %v192 = vld [vmem:[%s7 + $0x18] sm:$0xf]
    %v193 = vld [vmem:[%s7 + $0x1c] sm:$0xf]
    %v194 = vld [vmem:[%s8] sm:$0x1]
    %v196 = vperm.slane %v194, 0
    %v206 = vunpack.c.l.b16 %v186
    %v207 = vunpack.c.l.b16 %v187
    %v208 = vunpack.c.l.b16 %v188
    %v209 = vunpack.c.l.b16 %v189
    %v210 = vunpack.c.l.b16 %v190
    %v211 = vunpack.c.l.b16 %v191
    %v212 = vunpack.c.l.b16 %v192
    %v213 = vunpack.c.l.b16 %v193
    %v214 = vpack.c.b16 %v207, %v206
    %v215 = vpack.c.b16 %v209, %v208
    %v216 = vpack.c.b16 %v211, %v210
    %v217 = vpack.c.b16 %v213, %v212
    %vm222 = vcmask 523264
    %v224 = vsel %vm222, %v185, 0
    %226 = vmatpush.bf16.msra.mxu0 0
    %227 = vmatpush.bf16.msra.mxu0 0
    %228 = vmatpush.bf16.msra.mxu0 0
    %229 = vmatpush.bf16.msra.mxu0 0
    %230 = vmatpush.bf16.msra.mxu0 %v217
    %231 = vmatpush.bf16.msra.mxu0 %v216
    %232 = vmatpush.bf16.msra.mxu0 %v215
    %233 = vmatpush.bf16.msra.mxu0 %v214
    %234 = vmatmul.bf16.gmra.mxu0 %v224
    %v235 = vpop.f32.mrf.mxu0
    %v236 = vadd.f32 %v196, %v235
    %v237 = vpop.f32.mrf.mxu0
    %238 = vdwg.mxu0
    %v239 = vmax.f32 %v236, 0.0
    %v240 = vpack.c.bf16 %v239, %v239
    %v241 = vld [vmem:[%s9] sm:$0xf]
    %v242 = vld [vmem:[%s9 + $0x4] sm:$0xf]
    %v243 = vld [vmem:[%s9 + $0x8] sm:$0xf]
    %v244 = vld [vmem:[%s9 + $0xc] sm:$0xf]
    %v245 = vld [vmem:[%s10] sm:$0x1]
    %v247 = vperm.slane %v245, 0
    %v253 = vunpack.c.l.b16 %v241
    %v254 = vunpack.c.l.b16 %v242
    %v255 = vunpack.c.l.b16 %v243
    %v256 = vunpack.c.l.b16 %v244
    %v257 = vpack.c.b16 %v254, %v253
    %v258 = vpack.c.b16 %v256, %v255
    %vm261 = vcmask 261120
    %v263 = vsel %vm261, %v240, 0
    %265 = vmatpush.bf16.msra.mxu0 0
    %266 = vmatpush.bf16.msra.mxu0 0
    %267 = vmatpush.bf16.msra.mxu0 0
    %268 = vmatpush.bf16.msra.mxu0 0
    %269 = vmatpush.bf16.msra.mxu0 0
    %270 = vmatpush.bf16.msra.mxu0 0
    %271 = vmatpush.bf16.msra.mxu0 %v258
    %272 = vmatpush.bf16.msra.mxu0 %v257
    %273 = vmatmul.bf16.gmra.mxu0 %v263
    %v274 = vpop.f32.mrf.mxu0
    %v275 = vadd.f32 %v247, %v274
    %v276 = vpop.f32.mrf.mxu0
    %277 = vdwg.mxu0
    %v278 = vmax.f32 %v275, 0.0
    %vm279 = vcmask 130048
    %280 = vst.msk [vmem:[#allocation5] sm:$0xff] %vm279, %v278
    // Predicated region
    $region50: #{tpu_custom_call.1} parent=1 // pred_check
      _
    $region51: #{tpu_custom_call.1} parent=1 // pred_check_branch
      %282 = sbr.rel (0) target = $region53
    $region52: #{tpu_custom_call.1} parent=1 // pred_region
      %284 = vsyncadd [#allocation4], 0
      %s286 = sshll.u32 [#allocation5], 4
      %s287 = int_to_ptr.vmem [resolvable:$true] %s286
      %s288 = sshll.u32 %s11, 4
      %s289 = int_to_ptr.hbm [resolvable:$true] %s288
      %291 = dma.vmem_to_hbm [thread:$0]  %s287, 128, %s289, [#allocation4]
    $region53: #{tpu_custom_call.1} parent=1 // pred_fallthru
      _
    // Predicated region
    $region54: #{tpu_custom_call.1} parent=1 // pred_check
      _
    $region55: #{tpu_custom_call.1} parent=1 // pred_check_branch
      %293 = sbr.rel (0) target = $region57
    $region56: #{tpu_custom_call.1} parent=1 // pred_region
      %295 = dma.done [#allocation4], 128
    $region57: #{tpu_custom_call.1} parent=1 // pred_fallthru
      _
    %296 = vsyncpa [#allocation3], 1
    %297 = vsyncpa [#allocation4], 1

</llo_original>
